<compile_context>
chip_gen: v6e
topology: v6e:2x2x1
jax: 0.10.0
libtpu: 0.0.40
codegen_flags: <defaults>
</compile_context>

<pallas_src>
import jax
import jax.numpy as jnp
import numpy as np
from jax.experimental import pallas as pl
from jax.experimental.pallas import tpu as pltpu


def conv1_kernel(x_ref, w_ref, b_ref, o_ref):
    # x_ref: [TH+2, W+2, C_in]   halo'd, padded row tile (batch/tile dims squeezed)
    # w_ref: [3, 3*C_in, C_out]  kh-indexed, kw-major/channel-minor K, BN folded in
    # b_ref: [1, C_out]          conv bias + BN shift (f32)
    # o_ref: [TH*W, C_out]       flattened spatial rows
    THp2, Wp2, C_in = x_ref.shape
    W = Wp2 - 2
    TH = THp2 - 2
    C_out = o_ref.shape[-1]

    # kw-packed operand: three W-shifted slabs concatenated on the channel
    # (lane) axis, then a single compaction reshape -> [(TH+2)*W, 3*C_in].
    packed = jnp.concatenate(
        [x_ref[:, kw:kw + W, :] for kw in range(3)], axis=-1
    ).reshape(THp2 * W, 3 * C_in)

    # 3 MXU matmuls (K = 3*C_in) instead of 9 (K = C_in).  The kh shift is a
    # leading-dim row slice of `packed` (sublane-aligned when W % 8 == 0).
    acc = jnp.zeros((TH * W, C_out), jnp.float32)
    for kh in range(3):
        lhs = packed[kh * W:kh * W + TH * W]
        acc += jnp.dot(lhs, w_ref[kh], preferred_element_type=jnp.float32)

    y = acc + b_ref[...]                               # f32
    y = jnp.maximum(y, jnp.float32(0.01) * y)          # LeakyReLU(0.01)
    o_ref[...] = y.astype(o_ref.dtype)                 # no in-kernel reshape


def _pick_block_h(H, W, target):
    """Largest row-tile height <= target that divides H and keeps TH*W a
    multiple of 8 (sublane constraint on the flattened output block)."""
    for th in range(min(target, H), 0, -1):
        if H % th == 0 and (th * W) % 8 == 0:
            return th
    return H


def conv1_forward(x_nchw, w_oihw, conv_bias, gamma, beta,
                  running_mean, running_var, eps=1e-5, block_h=8):
    """Conv2d(3x3, stride 1, pad 1) + BatchNorm2d (eval) + LeakyReLU(0.01).

    x_nchw:  [B, C_in, H, W]      (PyTorch layout)
    w_oihw:  [C_out, C_in, 3, 3]  (PyTorch layout)
    returns: [B, C_out, H, W]

    block_h: row-tile height; sweep larger (32-64) on v5e/v6e for production
    shapes, keep smaller on v7x (64 MiB VMEM).
    """
    # TODO(synk): only inference-mode BatchNorm (running stats) is implemented;
    # training-mode batch statistics / running-stat updates are not.
    B, C_in, H, W = x_nchw.shape
    C_out = w_oihw.shape[0]

    # ---- BN folded into the conv (parameter-only, done once, in f32) ----
    scale = (gamma / jnp.sqrt(running_var + eps)).astype(jnp.float32)        # [C_out]
    w_khkwic = jnp.transpose(w_oihw, (2, 3, 1, 0)).astype(jnp.float32)       # [3,3,Ci,Co]
    w_packed = (w_khkwic * scale).reshape(3, 3 * C_in, C_out)                # kw-major K
    # Keep folded weights in f32 for f32 activations (no precision loss); only
    # cast down for low-precision activations so the MXU runs matched dtypes.
    if x_nchw.dtype != jnp.float32:
        w_packed = w_packed.astype(x_nchw.dtype)
    b_folded = ((conv_bias.astype(jnp.float32) - running_mean) * scale
                + beta).astype(jnp.float32).reshape(1, C_out)

    # ---- NHWC + pad + halo'd row tiles (one fused HBM rewrite of x) ----
    # TODO(synk): accepting NHWC input upstream would remove this rewrite.
    TH = _pick_block_h(H, W, block_h)
    NT = H // TH
    x_nhwc = jnp.transpose(x_nchw, (0, 2, 3, 1))
    x_pad = jnp.pad(x_nhwc, ((0, 0), (1, 1), (1, 1), (0, 0)))
    row_idx = np.arange(NT)[:, None] * TH + np.arange(TH + 2)[None, :]       # [NT,TH+2]
    x_tiles = x_pad[:, row_idx]                       # [B, NT, TH+2, W+2, C_in]

    bytes_el = x_nchw.dtype.itemsize
    cost = pl.CostEstimate(
        flops=2 * B * H * W * 9 * C_in * C_out,
        transcendentals=0,
        bytes_accessed=(B * NT * (TH + 2) * (W + 2) * C_in
                        + B * H * W * C_out) * bytes_el
                       + w_packed.size * w_packed.dtype.itemsize + C_out * 4,
    )

    out_flat = pl.pallas_call(
        conv1_kernel,
        out_shape=jax.ShapeDtypeStruct((B, H * W, C_out), x_nchw.dtype),
        grid=(B, NT),
        in_specs=[
            pl.BlockSpec((None, None, TH + 2, W + 2, C_in),
                         lambda b, i: (b, i, 0, 0, 0)),
            pl.BlockSpec((3, 3 * C_in, C_out), lambda b, i: (0, 0, 0)),  # resident
            pl.BlockSpec((1, C_out), lambda b, i: (0, 0)),               # resident
        ],
        out_specs=pl.BlockSpec((None, TH * W, C_out), lambda b, i: (b, i, 0)),
        compiler_params=pltpu.CompilerParams(
            dimension_semantics=("parallel", "parallel")),
        cost_estimate=cost,
    )(x_tiles, w_packed, b_folded)

    return out_flat.reshape(B, H, W, C_out).transpose(0, 3, 1, 2)


if __name__ == "__main__":
    # Small shapes consistent with the module: batch=2, C_in=4, C_out=8, 16x16.
    B, C_in, C_out, H, W = 2, 4, 8, 16, 16
    eps = 1e-5

    key = jax.random.PRNGKey(0)
    kx, kw, kb, kg, kbe, km, kv = jax.random.split(key, 7)

    x = jax.random.normal(kx, (B, C_in, H, W), dtype=jnp.float32)
    w = jax.random.normal(kw, (C_out, C_in, 3, 3), dtype=jnp.float32) * 0.2
    b = jax.random.normal(kb, (C_out,), dtype=jnp.float32) * 0.1
    gamma = 1.0 + 0.1 * jax.random.normal(kg, (C_out,), dtype=jnp.float32)
    beta = 0.1 * jax.random.normal(kbe, (C_out,), dtype=jnp.float32)
    running_mean = 0.1 * jax.random.normal(km, (C_out,), dtype=jnp.float32)
    running_var = jnp.abs(jax.random.normal(kv, (C_out,), dtype=jnp.float32)) + 0.5

    out = conv1_forward(x, w, b, gamma, beta, running_mean, running_var, eps)
    jax.block_until_ready(out)

    # Pure-JAX reference of the same math (eval-mode BatchNorm).
    conv = jax.lax.conv_general_dilated(
        x, w, window_strides=(1, 1), padding=((1, 1), (1, 1)),
        dimension_numbers=("NCHW", "OIHW", "NCHW"),
        precision=jax.lax.Precision.HIGHEST)
    conv = conv + b.reshape(1, C_out, 1, 1)
    bn = ((conv - running_mean.reshape(1, C_out, 1, 1))
          / jnp.sqrt(running_var.reshape(1, C_out, 1, 1) + eps)
          * gamma.reshape(1, C_out, 1, 1) + beta.reshape(1, C_out, 1, 1))
    ref = jnp.where(bn >= 0, bn, 0.01 * bn)

    assert out.shape == ref.shape
    # Tolerance is loose enough to absorb possible reduced-precision (bf16
    # pass) MXU matmul behaviour while still catching any structural bug
    # (misaligned taps / wrong BN fold would show errors of order 0.1+).
    err = float(jnp.max(jnp.abs(out - ref)))
    assert err < 1e-2, f"mismatch vs reference, max abs err = {err}"
    print("KERNEL_OK")
</pallas_src>

<mosaic_0001>
module attributes {stable_mosaic.version = 11 : i64} {
  func.func @conv1_kernel(%arg0: i32, %arg1: i32, %arg2: memref<1x1x10x18x4xf32, #tpu.memory_space<vmem>>, %arg3: memref<3x12x8xf32, #tpu.memory_space<vmem>>, %arg4: memref<1x8xf32, #tpu.memory_space<vmem>>, %arg5: memref<1x128x8xf32, #tpu.memory_space<vmem>>) attributes {dimension_semantics = [#tpu.dimension_semantics<parallel>, #tpu.dimension_semantics<parallel>], iteration_bounds = array<i64: 2, 2>, scalar_prefetch = 0 : i64, scratch_operands = 0 : i64, tpu.core_type = #tpu.core_type<tc>, window_params = [{transform_indices = @transform_0, window_bounds = array<i64: 1, 1, 10, 18, 4>}, {pipeline_mode = #tpu.pipeline_mode<synchronous>, transform_indices = @transform_1, window_bounds = array<i64: 3, 12, 8>}, {pipeline_mode = #tpu.pipeline_mode<synchronous>, transform_indices = @transform_2, window_bounds = array<i64: 1, 8>}, {transform_indices = @transform_3, window_bounds = array<i64: 1, 128, 8>}]} {
    %c0 = arith.constant 0 : index
    %c0_0 = arith.constant 0 : index
    %c0_1 = arith.constant 0 : index
    %c0_2 = arith.constant 0 : index
    %c0_3 = arith.constant 0 : index
    %0 = vector.load %arg2[%c0, %c0_0, %c0_1, %c0_2, %c0_3] : memref<1x1x10x18x4xf32, #tpu.memory_space<vmem>>, vector<1x1x10x16x4xf32>
    %1 = vector.shape_cast %0 : vector<1x1x10x16x4xf32> to vector<10x16x4xf32>
    %c0_4 = arith.constant 0 : index
    %c0_5 = arith.constant 0 : index
    %c0_6 = arith.constant 0 : index
    %c1 = arith.constant 1 : index
    %c0_7 = arith.constant 0 : index
    %2 = vector.load %arg2[%c0_4, %c0_5, %c0_6, %c1, %c0_7] : memref<1x1x10x18x4xf32, #tpu.memory_space<vmem>>, vector<1x1x10x16x4xf32>
    %3 = vector.shape_cast %2 : vector<1x1x10x16x4xf32> to vector<10x16x4xf32>
    %c0_8 = arith.constant 0 : index
    %c0_9 = arith.constant 0 : index
    %c0_10 = arith.constant 0 : index
    %c2 = arith.constant 2 : index
    %c0_11 = arith.constant 0 : index
    %4 = vector.load %arg2[%c0_8, %c0_9, %c0_10, %c2, %c0_11] : memref<1x1x10x18x4xf32, #tpu.memory_space<vmem>>, vector<1x1x10x16x4xf32>
    %5 = vector.shape_cast %4 : vector<1x1x10x16x4xf32> to vector<10x16x4xf32>
    %6 = tpu.concatenate %1, %3, %5 in 2 : vector<10x16x4xf32>, vector<10x16x4xf32>, vector<10x16x4xf32> -> vector<10x16x12xf32>
    %7 = vector.shape_cast %6 : vector<10x16x12xf32> to vector<160x12xf32>
    %cst = arith.constant 0.000000e+00 : f32
    %8 = vector.broadcast %cst : f32 to vector<128x8xf32>
    %9 = vector.extract_strided_slice %7 {offsets = [0, 0], sizes = [128, 12], strides = [1, 1]} : vector<160x12xf32> to vector<128x12xf32>
    %c0_12 = arith.constant 0 : index
    %c0_13 = arith.constant 0 : index
    %c0_14 = arith.constant 0 : index
    %10 = vector.load %arg3[%c0_12, %c0_13, %c0_14] : memref<3x12x8xf32, #tpu.memory_space<vmem>>, vector<1x12x8xf32>
    %11 = vector.shape_cast %10 : vector<1x12x8xf32> to vector<12x8xf32>
    %cst_15 = arith.constant dense<0.000000e+00> : vector<128x8xf32>
    %12 = tpu.matmul %9, %11, %cst_15 {dimension_numbers = #tpu.dot_dimension_numbers<[1], [0], [0], [1], [0, 0, 1, 1], [], []>} : vector<128x12xf32>, vector<12x8xf32>, vector<128x8xf32> -> vector<128x8xf32>
    %13 = arith.addf %8, %12 : vector<128x8xf32>
    %14 = vector.extract_strided_slice %7 {offsets = [16, 0], sizes = [128, 12], strides = [1, 1]} : vector<160x12xf32> to vector<128x12xf32>
    %c1_16 = arith.constant 1 : index
    %c0_17 = arith.constant 0 : index
    %c0_18 = arith.constant 0 : index
    %15 = vector.load %arg3[%c1_16, %c0_17, %c0_18] : memref<3x12x8xf32, #tpu.memory_space<vmem>>, vector<1x12x8xf32>
    %16 = vector.shape_cast %15 : vector<1x12x8xf32> to vector<12x8xf32>
    %cst_19 = arith.constant dense<0.000000e+00> : vector<128x8xf32>
    %17 = tpu.matmul %14, %16, %cst_19 {dimension_numbers = #tpu.dot_dimension_numbers<[1], [0], [0], [1], [0, 0, 1, 1], [], []>} : vector<128x12xf32>, vector<12x8xf32>, vector<128x8xf32> -> vector<128x8xf32>
    %18 = arith.addf %13, %17 : vector<128x8xf32>
    %19 = vector.extract_strided_slice %7 {offsets = [32, 0], sizes = [128, 12], strides = [1, 1]} : vector<160x12xf32> to vector<128x12xf32>
    %c2_20 = arith.constant 2 : index
    %c0_21 = arith.constant 0 : index
    %c0_22 = arith.constant 0 : index
    %20 = vector.load %arg3[%c2_20, %c0_21, %c0_22] : memref<3x12x8xf32, #tpu.memory_space<vmem>>, vector<1x12x8xf32>
    %21 = vector.shape_cast %20 : vector<1x12x8xf32> to vector<12x8xf32>
    %cst_23 = arith.constant dense<0.000000e+00> : vector<128x8xf32>
    %22 = tpu.matmul %19, %21, %cst_23 {dimension_numbers = #tpu.dot_dimension_numbers<[1], [0], [0], [1], [0, 0, 1, 1], [], []>} : vector<128x12xf32>, vector<12x8xf32>, vector<128x8xf32> -> vector<128x8xf32>
    %23 = arith.addf %18, %22 : vector<128x8xf32>
    %c0_24 = arith.constant 0 : index
    %c0_25 = arith.constant 0 : index
    %24 = vector.load %arg4[%c0_24, %c0_25] : memref<1x8xf32, #tpu.memory_space<vmem>>, vector<1x8xf32>
    %25 = vector.broadcast %24 : vector<1x8xf32> to vector<128x8xf32>
    %26 = arith.addf %23, %25 : vector<128x8xf32>
    %cst_26 = arith.constant 0.00999999977 : f32
    %27 = vector.broadcast %cst_26 : f32 to vector<128x8xf32>
    %28 = arith.mulf %27, %26 : vector<128x8xf32>
    %29 = arith.maximumf %26, %28 : vector<128x8xf32>
    %c0_27 = arith.constant 0 : index
    %c0_28 = arith.constant 0 : index
    %c0_29 = arith.constant 0 : index
    %30 = vector.load %arg5[%c0_27, %c0_28, %c0_29] : memref<1x128x8xf32, #tpu.memory_space<vmem>>, vector<1x128x8xf32>
    %31 = vector.shape_cast %30 : vector<1x128x8xf32> to vector<128x8xf32>
    %32 = vector.shape_cast %29 : vector<128x8xf32> to vector<1x128x8xf32>
    tpu.vector_store %arg5[%c0_27, %c0_28, %c0_29], %32 {strides = array<i32>} : memref<1x128x8xf32, #tpu.memory_space<vmem>>, vector<1x128x8xf32>,
    return
  }
  func.func @transform_0(%arg0: i32, %arg1: i32) -> (i32, i32, i32, i32, i32) {
    %c0_i32 = arith.constant 0 : i32
    %c0_i32_0 = arith.constant 0 : i32
    %c0_i32_1 = arith.constant 0 : i32
    %c0_i32_2 = arith.constant 0 : i32
    return %arg0, %arg1, %c0_i32, %c0_i32_0, %c0_i32_1 : i32, i32, i32, i32, i32
  }
  func.func @transform_1(%arg0: i32, %arg1: i32) -> (i32, i32, i32) {
    %c0_i32 = arith.constant 0 : i32
    %c0_i32_0 = arith.constant 0 : i32
    %c0_i32_1 = arith.constant 0 : i32
    %c0_i32_2 = arith.constant 0 : i32
    return %c0_i32, %c0_i32_0, %c0_i32_1 : i32, i32, i32
  }
  func.func @transform_2(%arg0: i32, %arg1: i32) -> (i32, i32) {
    %c0_i32 = arith.constant 0 : i32
    %c0_i32_0 = arith.constant 0 : i32
    %c0_i32_1 = arith.constant 0 : i32
    return %c0_i32, %c0_i32_0 : i32, i32
  }
  func.func @transform_3(%arg0: i32, %arg1: i32) -> (i32, i32, i32) {
    %c0_i32 = arith.constant 0 : i32
    %c0_i32_0 = arith.constant 0 : i32
    return %arg0, %arg1, %c0_i32 : i32, i32, i32
  }
}

</mosaic_0001>

<llo_original>
// kernel: tpu_custom_call.1
$region0: #{tpu_custom_call.1}
  #allocation0 [shape = 'u32[]', space=smem, size = 0x4, offset = 0x4, fixed_abs, tag = 'smem constant byte address 0x4 - core index']
  #allocation1 [shape = 'u32[144,128]{1,0:T(1,128)}', space=vmem, size = 0x12000, scoped, tag = 'internal scratch']
  %s0 = inlined_call_operand.vmem [shape: f32[2,2,10,18,4], index: 0, kind: input, shape index: {}]
  %s1 = inlined_call_operand.vmem [shape: f32[3,12,8], index: 1, kind: input, shape index: {}]
  %s2 = inlined_call_operand.vmem [shape: f32[1,8], index: 2, kind: input, shape index: {}]
  %s3 = inlined_call_operand.vmem [shape: f32[2,256,8], index: 3, kind: output, shape index: {}]
  %s4 = sld [smem:[#allocation0]]
  $region45: #{tpu_custom_call.1} parent=0
    _
  %s6 = ssub.s32 1, %s4
  %s7 = scalar_select 0, %s6, %s4
  loop: start=0, step=1, limit=6
  $region2: #{tpu_custom_call.1} parent=0 // loop_pre_header
    _
  $region3: #{tpu_custom_call.1} parent=0 // loop_header
    %s9 = sphi 0, %s13
    %p10 = scmp.ge.s32.totalorder %s9, 6
    %s16 = sphi 0, %s28
    %s17 = sphi 0, %s24
    %s18 = sphi 0, %s16
    %s19 = sphi 0, %s17
    %s20 = sphi 0, %s18
    %s21 = sphi 0, %s19
    %s33 = sphi 0, %s35
    %s36 = sphi 0, %s33
    %s37 = sphi 0, %s36
    %s53 = sphi 0, %s37
    %s57 = sphi 0, %s57
    %s59 = sphi 0, %s57
    %s60 = sphi 0, %s59
    %s74 = sphi 0, %s60
    %s78 = sphi 0, %s78
    %s80 = sphi 0, %s78
    %s81 = sphi 0, %s80
    %s95 = sphi 0, %s81
    %s103 = sphi 0, %s105
    %s106 = sphi 0, %s103
    %s107 = sphi 0, %s106
    %s123 = sphi 0, %s107
  $region4: #{tpu_custom_call.1} parent=0 // loop_header_branch
    %12 = sbr.rel (%p10) target = $region8
  $region5: #{tpu_custom_call.1} parent=0 // loop_body
    %s14 = ssub.s32 %s9, 1
    %s15 = ssub.s32 %s9, 2
    %s22 = sadd.s32 1, %s17
    %p23 = scmp.ge.s32.totalorder %s22, 2
    %s24 = scalar_select %p23, 0, %s22
    %s25 = sadd.s32 1, %s16
    %s26 = scalar_select %p23, %s25, %s16
    %p27 = scmp.ge.s32.totalorder %s26, 2
    %s28 = scalar_select %p27, 0, %s26
    %s29 = ssub.s32 %s16, %s28
    %s30 = ssub.s32 %s17, %s24
    %s31 = sor.u32 %s29, %s30
    %p32 = scmp.eq.s32.totalorder %s31, 0
    %s34 = sadd.s32 %s33, 1
    %s35 = scalar_select %p32, %s33, %s34
    %p38 = pneg %p32
    %p39 = scmp.eq.s32.totalorder %s9, 3
    %p40 = por %p38, %p39
    %p41 = scmp.ne.s32.totalorder %s33, %s36
    %p42 = scmp.eq.s32.totalorder %s9, 0
    %p43 = por %p41, %p42
    %p44 = scmp.ne.s32.totalorder %s33, %s36
    %p45 = scmp.eq.s32.totalorder %s14, 3
    %p46 = por %p44, %p45
    %p47 = scmp.ne.s32.totalorder %s36, %s37
    %p48 = scmp.eq.s32.totalorder %s14, 0
    %p49 = por %p47, %p48
    %p50 = scmp.ne.s32.totalorder %s36, %s37
    %p51 = scmp.eq.s32.totalorder %s15, 3
    %p52 = por %p50, %p51
    %p54 = scmp.ne.s32.totalorder %s37, %s53
    %p55 = scmp.eq.s32.totalorder %s15, 0
    %p56 = por %p54, %p55
    %s58 = sadd.s32 %s57, 1
    %p61 = scmp.eq.s32.totalorder %s9, 3
    %p62 = scmp.ne.s32.totalorder %s57, %s59
    %p63 = scmp.eq.s32.totalorder %s9, 0
    %p64 = por %p62, %p63
    %p65 = scmp.ne.s32.totalorder %s57, %s59
    %p66 = scmp.eq.s32.totalorder %s14, 3
    %p67 = por %p65, %p66
    %p68 = scmp.ne.s32.totalorder %s59, %s60
    %p69 = scmp.eq.s32.totalorder %s14, 0
    %p70 = por %p68, %p69
    %p71 = scmp.ne.s32.totalorder %s59, %s60
    %p72 = scmp.eq.s32.totalorder %s15, 3
    %p73 = por %p71, %p72
    %p75 = scmp.ne.s32.totalorder %s60, %s74
    %p76 = scmp.eq.s32.totalorder %s15, 0
    %p77 = por %p75, %p76
    %s79 = sadd.s32 %s78, 1
    %p82 = scmp.eq.s32.totalorder %s9, 3
    %p83 = scmp.ne.s32.totalorder %s78, %s80
    %p84 = scmp.eq.s32.totalorder %s9, 0
    %p85 = por %p83, %p84
    %p86 = scmp.ne.s32.totalorder %s78, %s80
    %p87 = scmp.eq.s32.totalorder %s14, 3
    %p88 = por %p86, %p87
    %p89 = scmp.ne.s32.totalorder %s80, %s81
    %p90 = scmp.eq.s32.totalorder %s14, 0
    %p91 = por %p89, %p90
    %p92 = scmp.ne.s32.totalorder %s80, %s81
    %p93 = scmp.eq.s32.totalorder %s15, 3
    %p94 = por %p92, %p93
    %p96 = scmp.ne.s32.totalorder %s81, %s95
    %p97 = scmp.eq.s32.totalorder %s15, 0
    %p98 = por %p96, %p97
    %s99 = ssub.s32 %s16, %s28
    %s100 = ssub.s32 %s17, %s24
    %s101 = sor.u32 %s99, %s100
    %p102 = scmp.eq.s32.totalorder %s101, 0
    %s104 = sadd.s32 %s103, 1
    %s105 = scalar_select %p102, %s103, %s104
    %p108 = pneg %p102
    %p109 = scmp.eq.s32.totalorder %s9, 3
    %p110 = por %p108, %p109
    %p111 = scmp.ne.s32.totalorder %s103, %s106
    %p112 = scmp.eq.s32.totalorder %s9, 0
    %p113 = por %p111, %p112
    %p114 = scmp.ne.s32.totalorder %s103, %s106
    %p115 = scmp.eq.s32.totalorder %s14, 3
    %p116 = por %p114, %p115
    %p117 = scmp.ne.s32.totalorder %s106, %s107
    %p118 = scmp.eq.s32.totalorder %s14, 0
    %p119 = por %p117, %p118
    %p120 = scmp.ne.s32.totalorder %s106, %s107
    %p121 = scmp.eq.s32.totalorder %s15, 3
    %p122 = por %p120, %p121
    %p124 = scmp.ne.s32.totalorder %s107, %s123
    %p125 = scmp.eq.s32.totalorder %s15, 0
    %p126 = por %p124, %p125
    %p127 = scmp.le.s32.totalorder 1, %s9
    %p128 = scmp.lt.s32.totalorder %s9, 5
    %p129 = pnand %p127, %p128
    %p130 = pneg %p129
    // Predicated region
    $region9: #{tpu_custom_call.1} parent=5 // pred_check
      _
    $region10: #{tpu_custom_call.1} parent=5 // pred_check_branch
      %132 = sbr.rel (%p129) target = $region12
    $region11: #{tpu_custom_call.1} parent=5 // pred_region
      %s133 = ssub.s32 %s9, 1
      // Predicated region
      $region13: #{tpu_custom_call.1} parent=11 // pred_check
        %p134 = pneg %p70
      $region14: #{tpu_custom_call.1} parent=11 // pred_check_branch
        %136 = sbr.rel (%p134) target = $region16
      $region15: #{tpu_custom_call.1} parent=11 // pred_region
        _
      $region16: #{tpu_custom_call.1} parent=11 // pred_fallthru
        _
      // Predicated region
      $region17: #{tpu_custom_call.1} parent=11 // pred_check
        %p137 = pneg %p91
      $region18: #{tpu_custom_call.1} parent=11 // pred_check_branch
        %139 = sbr.rel (%p137) target = $region20
      $region19: #{tpu_custom_call.1} parent=11 // pred_region
        _
      $region20: #{tpu_custom_call.1} parent=11 // pred_fallthru
        _
    $region12: #{tpu_custom_call.1} parent=5 // pred_fallthru
      _
    %p140 = scmp.lt.s32.totalorder %s9, 4
    // Predicated region
    $region21: #{tpu_custom_call.1} parent=5 // pred_check
      %p141 = pneg %p140
    $region22: #{tpu_custom_call.1} parent=5 // pred_check_branch
      %143 = sbr.rel (%p141) target = $region24
    $region23: #{tpu_custom_call.1} parent=5 // pred_region
      // Predicated region
      $region25: #{tpu_custom_call.1} parent=23 // pred_check
        %p144 = pneg %p43
      $region26: #{tpu_custom_call.1} parent=23 // pred_check_branch
        %146 = sbr.rel (%p144) target = $region28
      $region27: #{tpu_custom_call.1} parent=23 // pred_region
        %p147 = scmp.lt.s32.totalorder %s16, 1
        %s148 = scalar_select %p147, %s16, 1
        %p149 = scmp.lt.s32.totalorder %s17, 1
        %s150 = scalar_select %p149, %s17, 1
        %s151 = smul.addr %s150, 30
        %s152 = smul.addr %s148, 60
        %s153 = sadd.s32 %s151, %s152
        %s154 = smul.addr %s153, 8
        %s155 = scalar_lea.vmem %s0, %s154
      $region28: #{tpu_custom_call.1} parent=23 // pred_fallthru
        _
    $region24: #{tpu_custom_call.1} parent=5 // pred_fallthru
      _
    %p156 = scmp.le.s32.totalorder 1, %s9
    %p157 = scmp.lt.s32.totalorder %s9, 5
    %p158 = pnand %p156, %p157
    %p159 = pneg %p158
    // Predicated region
    $region29: #{tpu_custom_call.1} parent=5 // pred_check
      _
    $region30: #{tpu_custom_call.1} parent=5 // pred_check_branch
      %161 = sbr.rel (%p158) target = $region32
    $region31: #{tpu_custom_call.1} parent=5 // pred_region
      %s162 = ssub.s32 %s9, 1
      %p163 = scmp.lt.s32.totalorder %s18, 1
      %s164 = scalar_select %p163, %s18, 1
      %p165 = scmp.lt.s32.totalorder %s19, 1
      %s166 = scalar_select %p165, %s19, 1
      %s167 = smul.addr %s166, 30
      %s168 = smul.addr %s164, 60
      %s169 = sadd.s32 %s167, %s168
      %s170 = smul.addr %s169, 8
      %s171 = scalar_lea.vmem %s0, %s170
      %p172 = pneg %p49
      %p173 = pneg %p46
      %p174 = pneg %p70
      %p175 = pneg %p67
      %p176 = pneg %p91
      %p177 = pneg %p88
      %p178 = pneg %p119
      %p179 = pneg %p116
      %s180 = smul.u32 16, %s19
      %p181 = scmp.lt.s32.totalorder %s18, 1
      %s182 = scalar_select %p181, %s18, 1
      %p183 = scmp.lt.s32.totalorder %s180, 31
      %s184 = scalar_select %p183, %s180, 31
      %s185 = smul.addr %s182, 32
      %s186 = sadd.s32 %s184, %s185
      %s187 = smul.addr %s186, 8
      %s188 = scalar_lea.vmem %s3, %s187
      %p189 = scmp.lt.s32.totalorder %s18, 1
      %s190 = scalar_select %p189, %s18, 1
      %p191 = scmp.lt.s32.totalorder %s19, 1
      %s192 = scalar_select %p191, %s19, 1
      %s193 = smul.addr %s192, 30
      %s194 = smul.addr %s190, 60
      %s195 = sadd.s32 %s193, %s194
      %s196 = smul.addr %s195, 8
      %s197 = scalar_lea.vmem %s0, %s196
      %s198 = smul.u32 16, %s19
      %p199 = scmp.lt.s32.totalorder %s18, 1
      %s200 = scalar_select %p199, %s18, 1
      %p201 = scmp.lt.s32.totalorder %s198, 31
      %s202 = scalar_select %p201, %s198, 31
      %s203 = smul.addr %s200, 32
      %s204 = sadd.s32 %s202, %s203
      %s205 = smul.addr %s204, 8
      %s206 = scalar_lea.vmem %s3, %s205
      %s207 = smul.u32 16, %s19
      %v208 = vld [vmem:[%s197] sm:$0xff]
      %v209 = vld [vmem:[%s197 + $0x8] sm:$0xff]
      %v210 = vld [vmem:[%s197 + $0x18] sm:$0xff]
      %v211 = vld [vmem:[%s197 + $0x20] sm:$0xff]
      %v212 = vld [vmem:[%s197 + $0x30] sm:$0xff]
      %v213 = vld [vmem:[%s197 + $0x38] sm:$0xff]
      %v214 = vld [vmem:[%s197 + $0x48] sm:$0xff]
      %v215 = vld [vmem:[%s197 + $0x50] sm:$0xff]
      %v216 = vld [vmem:[%s197 + $0x60] sm:$0xff]
      %v217 = vld [vmem:[%s197 + $0x68] sm:$0xff]
      %v218 = vld [vmem:[%s197 + $0x78] sm:$0xff]
      %v219 = vld [vmem:[%s197 + $0x80] sm:$0xff]
      %v220 = vld [vmem:[%s197 + $0x90] sm:$0xff]
      %v221 = vld [vmem:[%s197 + $0x98] sm:$0xff]
      %v222 = vld [vmem:[%s197 + $0xa8] sm:$0xff]
      %v223 = vld [vmem:[%s197 + $0xb0] sm:$0xff]
      %v224 = vld [vmem:[%s197 + $0xc0] sm:$0xff]
      %v225 = vld [vmem:[%s197 + $0xc8] sm:$0xff]
      %v226 = vld [vmem:[%s197 + $0xd8] sm:$0xff]
      %v227 = vld [vmem:[%s197 + $0xe0] sm:$0xff]
      %v228 = vld [vmem:[%s197 + $0x1] sm:$0xff]
      %v229 = vld [vmem:[%s197 + $0x9] sm:$0xff]
      %v230 = vld [vmem:[%s197 + $0x19] sm:$0xff]
      %v231 = vld [vmem:[%s197 + $0x21] sm:$0xff]
      %v232 = vld [vmem:[%s197 + $0x31] sm:$0xff]
      %v233 = vld [vmem:[%s197 + $0x39] sm:$0xff]
      %v234 = vld [vmem:[%s197 + $0x49] sm:$0xff]
      %v235 = vld [vmem:[%s197 + $0x51] sm:$0xff]
      %v236 = vld [vmem:[%s197 + $0x61] sm:$0xff]
      %v237 = vld [vmem:[%s197 + $0x69] sm:$0xff]
      %v238 = vld [vmem:[%s197 + $0x79] sm:$0xff]
      %v239 = vld [vmem:[%s197 + $0x81] sm:$0xff]
      %v240 = vld [vmem:[%s197 + $0x91] sm:$0xff]
      %v241 = vld [vmem:[%s197 + $0x99] sm:$0xff]
      %v242 = vld [vmem:[%s197 + $0xa9] sm:$0xff]
      %v243 = vld [vmem:[%s197 + $0xb1] sm:$0xff]
      %v244 = vld [vmem:[%s197 + $0xc1] sm:$0xff]
      %v245 = vld [vmem:[%s197 + $0xc9] sm:$0xff]
      %v246 = vld [vmem:[%s197 + $0xd9] sm:$0xff]
      %v247 = vld [vmem:[%s197 + $0xe1] sm:$0xff]
      %v248 = vld [vmem:[%s197 + $0x2] sm:$0xff]
      %v249 = vld [vmem:[%s197 + $0xa] sm:$0xff]
      %v250 = vld [vmem:[%s197 + $0x1a] sm:$0xff]
      %v251 = vld [vmem:[%s197 + $0x22] sm:$0xff]
      %v252 = vld [vmem:[%s197 + $0x32] sm:$0xff]
      %v253 = vld [vmem:[%s197 + $0x3a] sm:$0xff]
      %v254 = vld [vmem:[%s197 + $0x4a] sm:$0xff]
      %v255 = vld [vmem:[%s197 + $0x52] sm:$0xff]
      %v256 = vld [vmem:[%s197 + $0x62] sm:$0xff]
      %v257 = vld [vmem:[%s197 + $0x6a] sm:$0xff]
      %v258 = vld [vmem:[%s197 + $0x7a] sm:$0xff]
      %v259 = vld [vmem:[%s197 + $0x82] sm:$0xff]
      %v260 = vld [vmem:[%s197 + $0x92] sm:$0xff]
      %v261 = vld [vmem:[%s197 + $0x9a] sm:$0xff]
      %v262 = vld [vmem:[%s197 + $0xaa] sm:$0xff]
      %v263 = vld [vmem:[%s197 + $0xb2] sm:$0xff]
      %v264 = vld [vmem:[%s197 + $0xc2] sm:$0xff]
      %v265 = vld [vmem:[%s197 + $0xca] sm:$0xff]
      %v266 = vld [vmem:[%s197 + $0xda] sm:$0xff]
      %v267 = vld [vmem:[%s197 + $0xe2] sm:$0xff]
      %288 = vrot.lane.b32.xlu0 %v228, 4
      %v289 = vpop.permute.xlu0 %288
      %290 = vrot.lane.b32.xlu0 %v229, 4
      %v291 = vpop.permute.xlu0 %290
      %292 = vrot.lane.b32.xlu0 %v230, 4
      %v293 = vpop.permute.xlu0 %292
      %294 = vrot.lane.b32.xlu0 %v231, 4
      %v295 = vpop.permute.xlu0 %294
      %296 = vrot.lane.b32.xlu0 %v232, 4
      %v297 = vpop.permute.xlu0 %296
      %298 = vrot.lane.b32.xlu0 %v233, 4
      %v299 = vpop.permute.xlu0 %298
      %300 = vrot.lane.b32.xlu0 %v234, 4
      %v301 = vpop.permute.xlu0 %300
      %302 = vrot.lane.b32.xlu0 %v235, 4
      %v303 = vpop.permute.xlu0 %302
      %304 = vrot.lane.b32.xlu0 %v236, 4
      %v305 = vpop.permute.xlu0 %304
      %306 = vrot.lane.b32.xlu0 %v237, 4
      %v307 = vpop.permute.xlu0 %306
      %308 = vrot.lane.b32.xlu0 %v238, 4
      %v309 = vpop.permute.xlu0 %308
      %310 = vrot.lane.b32.xlu0 %v239, 4
      %v311 = vpop.permute.xlu0 %310
      %312 = vrot.lane.b32.xlu0 %v240, 4
      %v313 = vpop.permute.xlu0 %312
      %314 = vrot.lane.b32.xlu0 %v241, 4
      %v315 = vpop.permute.xlu0 %314
      %316 = vrot.lane.b32.xlu0 %v242, 4
      %v317 = vpop.permute.xlu0 %316
      %318 = vrot.lane.b32.xlu0 %v243, 4
      %v319 = vpop.permute.xlu0 %318
      %320 = vrot.lane.b32.xlu0 %v244, 4
      %v321 = vpop.permute.xlu0 %320
      %322 = vrot.lane.b32.xlu0 %v245, 4
      %v323 = vpop.permute.xlu0 %322
      %324 = vrot.lane.b32.xlu0 %v246, 4
      %v325 = vpop.permute.xlu0 %324
      %326 = vrot.lane.b32.xlu0 %v247, 4
      %v327 = vpop.permute.xlu0 %326
      %368 = vrot.lane.b32.xlu0 %v248, 8
      %v369 = vpop.permute.xlu0 %368
      %370 = vrot.lane.b32.xlu0 %v249, 8
      %v371 = vpop.permute.xlu0 %370
      %372 = vrot.lane.b32.xlu0 %v250, 8
      %v373 = vpop.permute.xlu0 %372
      %374 = vrot.lane.b32.xlu0 %v251, 8
      %v375 = vpop.permute.xlu0 %374
      %376 = vrot.lane.b32.xlu0 %v252, 8
      %v377 = vpop.permute.xlu0 %376
      %378 = vrot.lane.b32.xlu0 %v253, 8
      %v379 = vpop.permute.xlu0 %378
      %380 = vrot.lane.b32.xlu0 %v254, 8
      %v381 = vpop.permute.xlu0 %380
      %382 = vrot.lane.b32.xlu0 %v255, 8
      %v383 = vpop.permute.xlu0 %382
      %384 = vrot.lane.b32.xlu0 %v256, 8
      %v385 = vpop.permute.xlu0 %384
      %386 = vrot.lane.b32.xlu0 %v257, 8
      %v387 = vpop.permute.xlu0 %386
      %388 = vrot.lane.b32.xlu0 %v258, 8
      %v389 = vpop.permute.xlu0 %388
      %390 = vrot.lane.b32.xlu0 %v259, 8
      %v391 = vpop.permute.xlu0 %390
      %392 = vrot.lane.b32.xlu0 %v260, 8
      %v393 = vpop.permute.xlu0 %392
      %394 = vrot.lane.b32.xlu0 %v261, 8
      %v395 = vpop.permute.xlu0 %394
      %396 = vrot.lane.b32.xlu0 %v262, 8
      %v397 = vpop.permute.xlu0 %396
      %398 = vrot.lane.b32.xlu0 %v263, 8
      %v399 = vpop.permute.xlu0 %398
      %400 = vrot.lane.b32.xlu0 %v264, 8
      %v401 = vpop.permute.xlu0 %400
      %402 = vrot.lane.b32.xlu0 %v265, 8
      %v403 = vpop.permute.xlu0 %402
      %404 = vrot.lane.b32.xlu0 %v266, 8
      %v405 = vpop.permute.xlu0 %404
      %406 = vrot.lane.b32.xlu0 %v267, 8
      %v407 = vpop.permute.xlu0 %406
      %vm428 = vcmask 31744
      %v429 = vsel %vm428, %v208, %v289
      %v430 = vsel %vm428, %v209, %v291
      %v431 = vsel %vm428, %v210, %v293
      %v432 = vsel %vm428, %v211, %v295
      %v433 = vsel %vm428, %v212, %v297
      %v434 = vsel %vm428, %v213, %v299
      %v435 = vsel %vm428, %v214, %v301
      %v436 = vsel %vm428, %v215, %v303
      %v437 = vsel %vm428, %v216, %v305
      %v438 = vsel %vm428, %v217, %v307
      %v439 = vsel %vm428, %v218, %v309
      %v440 = vsel %vm428, %v219, %v311
      %v441 = vsel %vm428, %v220, %v313
      %v442 = vsel %vm428, %v221, %v315
      %v443 = vsel %vm428, %v222, %v317
      %v444 = vsel %vm428, %v223, %v319
      %v445 = vsel %vm428, %v224, %v321
      %v446 = vsel %vm428, %v225, %v323
      %v447 = vsel %vm428, %v226, %v325
      %v448 = vsel %vm428, %v227, %v327
      %vm449 = vcmask 64512
      %v450 = vsel %vm449, %v429, %v369
      %v451 = vsel %vm449, %v430, %v371
      %v452 = vsel %vm449, %v431, %v373
      %v453 = vsel %vm449, %v432, %v375
      %v454 = vsel %vm449, %v433, %v377
      %v455 = vsel %vm449, %v434, %v379
      %v456 = vsel %vm449, %v435, %v381
      %v457 = vsel %vm449, %v436, %v383
      %v458 = vsel %vm449, %v437, %v385
      %v459 = vsel %vm449, %v438, %v387
      %v460 = vsel %vm449, %v439, %v389
      %v461 = vsel %vm449, %v440, %v391
      %v462 = vsel %vm449, %v441, %v393
      %v463 = vsel %vm449, %v442, %v395
      %v464 = vsel %vm449, %v443, %v397
      %v465 = vsel %vm449, %v444, %v399
      %v466 = vsel %vm449, %v445, %v401
      %v467 = vsel %vm449, %v446, %v403
      %v468 = vsel %vm449, %v447, %v405
      %v469 = vsel %vm449, %v448, %v407
      %v470 = vld [vmem:[%s1] sm:$0xff]
      %v471 = vld [vmem:[%s1 + $0x8] sm:$0xf]
      %s472 = scalar_lea.vmem %s1, 16
      %v473 = vld [vmem:[%s472] sm:$0xff]
      %v474 = vld [vmem:[%s472 + $0x8] sm:$0xf]
      %vm475 = vcmask 97280
      %v477 = vsel %vm475, %v452, 0
      %v480 = vsel %vm475, %v453, 0
      %v483 = vsel %vm475, %v454, 0
      %v486 = vsel %vm475, %v455, 0
      %v489 = vsel %vm475, %v456, 0
      %v492 = vsel %vm475, %v457, 0
      %v495 = vsel %vm475, %v458, 0
      %v498 = vsel %vm475, %v459, 0
      %v501 = vsel %vm475, %v460, 0
      %v504 = vsel %vm475, %v461, 0
      %v507 = vsel %vm475, %v462, 0
      %v510 = vsel %vm475, %v463, 0
      %v513 = vsel %vm475, %v464, 0
      %v516 = vsel %vm475, %v465, 0
      %v519 = vsel %vm475, %v466, 0
      %v522 = vsel %vm475, %v467, 0
      %vm524 = vcmask 1043456
      %v526 = vsel %vm524, %v474, 0
      %528 = vmatprep.subr.mxu0 0.0
      %529 = vmatpush1.msra.mxu0 0.0
      %530 = vmatprep.subr.mxu0 0.0
      %531 = vmatpush1.msra.mxu0 0.0
      %532 = vmatprep.subr.mxu0 0.0
      %533 = vmatpush1.msra.mxu0 0.0
      %534 = vmatprep.subr.mxu0 0.0
      %535 = vmatpush1.msra.mxu0 0.0
      %536 = vmatprep.subr.mxu0 0.0
      %537 = vmatpush1.msra.mxu0 0.0
      %538 = vmatprep.subr.mxu0 0.0
      %539 = vmatpush1.msra.mxu0 0.0
      %540 = vmatprep.subr.mxu0 0.0
      %541 = vmatpush1.msra.mxu0 0.0
      %542 = vmatprep.subr.mxu0 0.0
      %543 = vmatpush1.msra.mxu0 0.0
      %544 = vmatprep.subr.mxu0 0.0
      %545 = vmatpush1.msra.mxu0 0.0
      %546 = vmatprep.subr.mxu0 0.0
      %547 = vmatpush1.msra.mxu0 0.0
      %548 = vmatprep.subr.mxu0 0.0
      %549 = vmatpush1.msra.mxu0 0.0
      %550 = vmatprep.subr.mxu0 0.0
      %551 = vmatpush1.msra.mxu0 0.0
      %552 = vmatprep.subr.mxu0 0.0
      %553 = vmatpush1.msra.mxu0 0.0
      %554 = vmatprep.subr.mxu0 0.0
      %555 = vmatpush1.msra.mxu0 0.0
      %556 = vmatprep.subr.mxu0 0.0
      %557 = vmatpush1.msra.mxu0 %v526
      %558 = vmatprep.subr.mxu0 0.0
      %559 = vmatpush1.msra.mxu0 %v473
      %560 = vmatprep.subr.mxu0 0.0
      %561 = vmatpush2.msra.mxu0 0.0
      %562 = vmatprep.subr.mxu0 0.0
      %563 = vmatpush2.msra.mxu0 0.0
      %564 = vmatprep.subr.mxu0 0.0
      %565 = vmatpush2.msra.mxu0 0.0
      %566 = vmatprep.subr.mxu0 0.0
      %567 = vmatpush2.msra.mxu0 0.0
      %568 = vmatprep.subr.mxu0 0.0
      %569 = vmatpush2.msra.mxu0 0.0
      %570 = vmatprep.subr.mxu0 0.0
      %571 = vmatpush2.msra.mxu0 0.0
      %572 = vmatprep.subr.mxu0 0.0
      %573 = vmatpush2.msra.mxu0 0.0
      %574 = vmatprep.subr.mxu0 0.0
      %575 = vmatpush2.msra.mxu0 0.0
      %576 = vmatprep.subr.mxu0 0.0
      %577 = vmatpush2.msra.mxu0 0.0
      %578 = vmatprep.subr.mxu0 0.0
      %579 = vmatpush2.msra.mxu0 0.0
      %580 = vmatprep.subr.mxu0 0.0
      %581 = vmatpush2.msra.mxu0 0.0
      %582 = vmatprep.subr.mxu0 0.0
      %583 = vmatpush2.msra.mxu0 0.0
      %584 = vmatprep.subr.mxu0 0.0
      %585 = vmatpush2.msra.mxu0 0.0
      %586 = vmatprep.subr.mxu0 0.0
      %587 = vmatpush2.msra.mxu0 0.0
      %588 = vmatprep.subr.mxu0 0.0
      %589 = vmatpush2.msra.mxu0 0.0
      %590 = vmatprep.subr.mxu0 0.0
      %591 = vmatpush2.msra.mxu0 0.0
      %592 = vmatprep.mubr.f32.mxu0 0.0
      %593 = vmatmul.mubr.f32.gmra.mxu0 %v477
      %v594 = vpop.f32.mrf.mxu0
      %v595 = vadd.f32 0.0, %v594
      %v596 = vpop.f32.mrf.mxu0
      %597 = vmatprep.mubr.f32.mxu0 0.0
      %598 = vmatmul.mubr.f32.gmra.mxu0 %v480
      %v599 = vpop.f32.mrf.mxu0
      %v600 = vadd.f32 0.0, %v599
      %v601 = vpop.f32.mrf.mxu0
      %602 = vmatprep.mubr.f32.mxu0 0.0
      %603 = vmatmul.mubr.f32.gmra.mxu0 %v483
      %v604 = vpop.f32.mrf.mxu0
      %v605 = vadd.f32 0.0, %v604
      %v606 = vpop.f32.mrf.mxu0
      %607 = vmatprep.mubr.f32.mxu0 0.0
      %608 = vmatmul.mubr.f32.gmra.mxu0 %v486
      %v609 = vpop.f32.mrf.mxu0
      %v610 = vadd.f32 0.0, %v609
      %v611 = vpop.f32.mrf.mxu0
      %612 = vmatprep.mubr.f32.mxu0 0.0
      %613 = vmatmul.mubr.f32.gmra.mxu0 %v489
      %v614 = vpop.f32.mrf.mxu0
      %v615 = vadd.f32 0.0, %v614
      %v616 = vpop.f32.mrf.mxu0
      %617 = vmatprep.mubr.f32.mxu0 0.0
      %618 = vmatmul.mubr.f32.gmra.mxu0 %v492
      %v619 = vpop.f32.mrf.mxu0
      %v620 = vadd.f32 0.0, %v619
      %v621 = vpop.f32.mrf.mxu0
      %622 = vmatprep.mubr.f32.mxu0 0.0
      %623 = vmatmul.mubr.f32.gmra.mxu0 %v495
      %v624 = vpop.f32.mrf.mxu0
      %v625 = vadd.f32 0.0, %v624
      %v626 = vpop.f32.mrf.mxu0
      %627 = vmatprep.mubr.f32.mxu0 0.0
      %628 = vmatmul.mubr.f32.gmra.mxu0 %v498
      %v629 = vpop.f32.mrf.mxu0
      %v630 = vadd.f32 0.0, %v629
      %v631 = vpop.f32.mrf.mxu0
      %632 = vmatprep.mubr.f32.mxu0 0.0
      %633 = vmatmul.mubr.f32.gmra.mxu0 %v501
      %v634 = vpop.f32.mrf.mxu0
      %v635 = vadd.f32 0.0, %v634
      %v636 = vpop.f32.mrf.mxu0
      %637 = vmatprep.mubr.f32.mxu0 0.0
      %638 = vmatmul.mubr.f32.gmra.mxu0 %v504
      %v639 = vpop.f32.mrf.mxu0
      %v640 = vadd.f32 0.0, %v639
      %v641 = vpop.f32.mrf.mxu0
      %642 = vmatprep.mubr.f32.mxu0 0.0
      %643 = vmatmul.mubr.f32.gmra.mxu0 %v507
      %v644 = vpop.f32.mrf.mxu0
      %v645 = vadd.f32 0.0, %v644
      %v646 = vpop.f32.mrf.mxu0
      %647 = vmatprep.mubr.f32.mxu0 0.0
      %648 = vmatmul.mubr.f32.gmra.mxu0 %v510
      %v649 = vpop.f32.mrf.mxu0
      %v650 = vadd.f32 0.0, %v649
      %v651 = vpop.f32.mrf.mxu0
      %652 = vmatprep.mubr.f32.mxu0 0.0
      %653 = vmatmul.mubr.f32.gmra.mxu0 %v513
      %v654 = vpop.f32.mrf.mxu0
      %v655 = vadd.f32 0.0, %v654
      %v656 = vpop.f32.mrf.mxu0
      %657 = vmatprep.mubr.f32.mxu0 0.0
      %658 = vmatmul.mubr.f32.gmra.mxu0 %v516
      %v659 = vpop.f32.mrf.mxu0
      %v660 = vadd.f32 0.0, %v659
      %v661 = vpop.f32.mrf.mxu0
      %662 = vmatprep.mubr.f32.mxu0 0.0
      %663 = vmatmul.mubr.f32.gmra.mxu0 %v519
      %v664 = vpop.f32.mrf.mxu0
      %v665 = vadd.f32 0.0, %v664
      %v666 = vpop.f32.mrf.mxu0
      %667 = vmatprep.mubr.f32.mxu0 0.0
      %668 = vmatmul.mubr.f32.gmra.mxu0 %v522
      %v669 = vpop.f32.mrf.mxu0
      %v670 = vadd.f32 0.0, %v669
      %v671 = vpop.f32.mrf.mxu0
      %672 = vdwg.mxu0
      %v674 = vsel %vm475, %v450, 0
      %v677 = vsel %vm475, %v451, 0
      %v680 = vsel %vm524, %v471, 0
      %682 = vmatprep.subr.mxu0 0.0
      %683 = vmatpush1.msra.mxu0 0.0
      %684 = vmatprep.subr.mxu0 0.0
      %685 = vmatpush1.msra.mxu0 0.0
      %686 = vmatprep.subr.mxu0 0.0
      %687 = vmatpush1.msra.mxu0 0.0
      %688 = vmatprep.subr.mxu0 0.0
      %689 = vmatpush1.msra.mxu0 0.0
      %690 = vmatprep.subr.mxu0 0.0
      %691 = vmatpush1.msra.mxu0 0.0
      %692 = vmatprep.subr.mxu0 0.0
      %693 = vmatpush1.msra.mxu0 0.0
      %694 = vmatprep.subr.mxu0 0.0
      %695 = vmatpush1.msra.mxu0 0.0
      %696 = vmatprep.subr.mxu0 0.0
      %697 = vmatpush1.msra.mxu0 0.0
      %698 = vmatprep.subr.mxu0 0.0
      %699 = vmatpush1.msra.mxu0 0.0
      %700 = vmatprep.subr.mxu0 0.0
      %701 = vmatpush1.msra.mxu0 0.0
      %702 = vmatprep.subr.mxu0 0.0
      %703 = vmatpush1.msra.mxu0 0.0
      %704 = vmatprep.subr.mxu0 0.0
      %705 = vmatpush1.msra.mxu0 0.0
      %706 = vmatprep.subr.mxu0 0.0
      %707 = vmatpush1.msra.mxu0 0.0
      %708 = vmatprep.subr.mxu0 0.0
      %709 = vmatpush1.msra.mxu0 0.0
      %710 = vmatprep.subr.mxu0 0.0
      %711 = vmatpush1.msra.mxu0 %v680
      %712 = vmatprep.subr.mxu0 0.0
      %713 = vmatpush1.msra.mxu0 %v470
      %714 = vmatprep.subr.mxu0 0.0
      %715 = vmatpush2.msra.mxu0 0.0
      %716 = vmatprep.subr.mxu0 0.0
      %717 = vmatpush2.msra.mxu0 0.0
      %718 = vmatprep.subr.mxu0 0.0
      %719 = vmatpush2.msra.mxu0 0.0
      %720 = vmatprep.subr.mxu0 0.0
      %721 = vmatpush2.msra.mxu0 0.0
      %722 = vmatprep.subr.mxu0 0.0
      %723 = vmatpush2.msra.mxu0 0.0
      %724 = vmatprep.subr.mxu0 0.0
      %725 = vmatpush2.msra.mxu0 0.0
      %726 = vmatprep.subr.mxu0 0.0
      %727 = vmatpush2.msra.mxu0 0.0
      %728 = vmatprep.subr.mxu0 0.0
      %729 = vmatpush2.msra.mxu0 0.0
      %730 = vmatprep.subr.mxu0 0.0
      %731 = vmatpush2.msra.mxu0 0.0
      %732 = vmatprep.subr.mxu0 0.0
      %733 = vmatpush2.msra.mxu0 0.0
      %734 = vmatprep.subr.mxu0 0.0
      %735 = vmatpush2.msra.mxu0 0.0
      %736 = vmatprep.subr.mxu0 0.0
      %737 = vmatpush2.msra.mxu0 0.0
      %738 = vmatprep.subr.mxu0 0.0
      %739 = vmatpush2.msra.mxu0 0.0
      %740 = vmatprep.subr.mxu0 0.0
      %741 = vmatpush2.msra.mxu0 0.0
      %742 = vmatprep.subr.mxu0 0.0
      %743 = vmatpush2.msra.mxu0 0.0
      %744 = vmatprep.subr.mxu0 0.0
      %745 = vmatpush2.msra.mxu0 0.0
      %746 = vmatprep.mubr.f32.mxu0 0.0
      %747 = vmatmul.mubr.f32.gmra.mxu0 %v674
      %v748 = vpop.f32.mrf.mxu0
      %v749 = vadd.f32 %v595, %v748
      %v750 = vpop.f32.mrf.mxu0
      %751 = vmatprep.mubr.f32.mxu0 0.0
      %752 = vmatmul.mubr.f32.gmra.mxu0 %v677
      %v753 = vpop.f32.mrf.mxu0
      %v754 = vadd.f32 %v600, %v753
      %v755 = vpop.f32.mrf.mxu0
      %756 = vmatprep.mubr.f32.mxu0 0.0
      %757 = vmatmul.mubr.f32.gmra.mxu0 %v477
      %v758 = vpop.f32.mrf.mxu0
      %v759 = vadd.f32 %v605, %v758
      %v760 = vpop.f32.mrf.mxu0
      %761 = vmatprep.mubr.f32.mxu0 0.0
      %762 = vmatmul.mubr.f32.gmra.mxu0 %v480
      %v763 = vpop.f32.mrf.mxu0
      %v764 = vadd.f32 %v610, %v763
      %v765 = vpop.f32.mrf.mxu0
      %766 = vmatprep.mubr.f32.mxu0 0.0
      %767 = vmatmul.mubr.f32.gmra.mxu0 %v483
      %v768 = vpop.f32.mrf.mxu0
      %v769 = vadd.f32 %v615, %v768
      %v770 = vpop.f32.mrf.mxu0
      %771 = vmatprep.mubr.f32.mxu0 0.0
      %772 = vmatmul.mubr.f32.gmra.mxu0 %v486
      %v773 = vpop.f32.mrf.mxu0
      %v774 = vadd.f32 %v620, %v773
      %v775 = vpop.f32.mrf.mxu0
      %776 = vmatprep.mubr.f32.mxu0 0.0
      %777 = vmatmul.mubr.f32.gmra.mxu0 %v489
      %v778 = vpop.f32.mrf.mxu0
      %v779 = vadd.f32 %v625, %v778
      %v780 = vpop.f32.mrf.mxu0
      %781 = vmatprep.mubr.f32.mxu0 0.0
      %782 = vmatmul.mubr.f32.gmra.mxu0 %v492
      %v783 = vpop.f32.mrf.mxu0
      %v784 = vadd.f32 %v630, %v783
      %v785 = vpop.f32.mrf.mxu0
      %786 = vmatprep.mubr.f32.mxu0 0.0
      %787 = vmatmul.mubr.f32.gmra.mxu0 %v495
      %v788 = vpop.f32.mrf.mxu0
      %v789 = vadd.f32 %v635, %v788
      %v790 = vpop.f32.mrf.mxu0
      %791 = vmatprep.mubr.f32.mxu0 0.0
      %792 = vmatmul.mubr.f32.gmra.mxu0 %v498
      %v793 = vpop.f32.mrf.mxu0
      %v794 = vadd.f32 %v640, %v793
      %v795 = vpop.f32.mrf.mxu0
      %796 = vmatprep.mubr.f32.mxu0 0.0
      %797 = vmatmul.mubr.f32.gmra.mxu0 %v501
      %v798 = vpop.f32.mrf.mxu0
      %v799 = vadd.f32 %v645, %v798
      %v800 = vpop.f32.mrf.mxu0
      %801 = vmatprep.mubr.f32.mxu0 0.0
      %802 = vmatmul.mubr.f32.gmra.mxu0 %v504
      %v803 = vpop.f32.mrf.mxu0
      %v804 = vadd.f32 %v650, %v803
      %v805 = vpop.f32.mrf.mxu0
      %806 = vmatprep.mubr.f32.mxu0 0.0
      %807 = vmatmul.mubr.f32.gmra.mxu0 %v507
      %v808 = vpop.f32.mrf.mxu0
      %v809 = vadd.f32 %v655, %v808
      %v810 = vpop.f32.mrf.mxu0
      %811 = vmatprep.mubr.f32.mxu0 0.0
      %812 = vmatmul.mubr.f32.gmra.mxu0 %v510
      %v813 = vpop.f32.mrf.mxu0
      %v814 = vadd.f32 %v660, %v813
      %v815 = vpop.f32.mrf.mxu0
      %816 = vmatprep.mubr.f32.mxu0 0.0
      %817 = vmatmul.mubr.f32.gmra.mxu0 %v513
      %v818 = vpop.f32.mrf.mxu0
      %v819 = vadd.f32 %v665, %v818
      %v820 = vpop.f32.mrf.mxu0
      %821 = vmatprep.mubr.f32.mxu0 0.0
      %822 = vmatmul.mubr.f32.gmra.mxu0 %v516
      %v823 = vpop.f32.mrf.mxu0
      %v824 = vadd.f32 %v670, %v823
      %v825 = vpop.f32.mrf.mxu0
      %826 = vdwg.mxu0
      %s827 = scalar_lea.vmem %s1, 32
      %v828 = vld [vmem:[%s827] sm:$0xff]
      %v829 = vld [vmem:[%s827 + $0x8] sm:$0xf]
      %v831 = vsel %vm475, %v468, 0
      %v834 = vsel %vm475, %v469, 0
      %v837 = vsel %vm524, %v829, 0
      %839 = vmatprep.subr.mxu0 0.0
      %840 = vmatpush1.msra.mxu0 0.0
      %841 = vmatprep.subr.mxu0 0.0
      %842 = vmatpush1.msra.mxu0 0.0
      %843 = vmatprep.subr.mxu0 0.0
      %844 = vmatpush1.msra.mxu0 0.0
      %845 = vmatprep.subr.mxu0 0.0
      %846 = vmatpush1.msra.mxu0 0.0
      %847 = vmatprep.subr.mxu0 0.0
      %848 = vmatpush1.msra.mxu0 0.0
      %849 = vmatprep.subr.mxu0 0.0
      %850 = vmatpush1.msra.mxu0 0.0
      %851 = vmatprep.subr.mxu0 0.0
      %852 = vmatpush1.msra.mxu0 0.0
      %853 = vmatprep.subr.mxu0 0.0
      %854 = vmatpush1.msra.mxu0 0.0
      %855 = vmatprep.subr.mxu0 0.0
      %856 = vmatpush1.msra.mxu0 0.0
      %857 = vmatprep.subr.mxu0 0.0
      %858 = vmatpush1.msra.mxu0 0.0
      %859 = vmatprep.subr.mxu0 0.0
      %860 = vmatpush1.msra.mxu0 0.0
      %861 = vmatprep.subr.mxu0 0.0
      %862 = vmatpush1.msra.mxu0 0.0
      %863 = vmatprep.subr.mxu0 0.0
      %864 = vmatpush1.msra.mxu0 0.0
      %865 = vmatprep.subr.mxu0 0.0
      %866 = vmatpush1.msra.mxu0 0.0
      %867 = vmatprep.subr.mxu0 0.0
      %868 = vmatpush1.msra.mxu0 %v837
      %869 = vmatprep.subr.mxu0 0.0
      %870 = vmatpush1.msra.mxu0 %v828
      %871 = vmatprep.subr.mxu0 0.0
      %872 = vmatpush2.msra.mxu0 0.0
      %873 = vmatprep.subr.mxu0 0.0
      %874 = vmatpush2.msra.mxu0 0.0
      %875 = vmatprep.subr.mxu0 0.0
      %876 = vmatpush2.msra.mxu0 0.0
      %877 = vmatprep.subr.mxu0 0.0
      %878 = vmatpush2.msra.mxu0 0.0
      %879 = vmatprep.subr.mxu0 0.0
      %880 = vmatpush2.msra.mxu0 0.0
      %881 = vmatprep.subr.mxu0 0.0
      %882 = vmatpush2.msra.mxu0 0.0
      %883 = vmatprep.subr.mxu0 0.0
      %884 = vmatpush2.msra.mxu0 0.0
      %885 = vmatprep.subr.mxu0 0.0
      %886 = vmatpush2.msra.mxu0 0.0
      %887 = vmatprep.subr.mxu0 0.0
      %888 = vmatpush2.msra.mxu0 0.0
      %889 = vmatprep.subr.mxu0 0.0
      %890 = vmatpush2.msra.mxu0 0.0
      %891 = vmatprep.subr.mxu0 0.0
      %892 = vmatpush2.msra.mxu0 0.0
      %893 = vmatprep.subr.mxu0 0.0
      %894 = vmatpush2.msra.mxu0 0.0
      %895 = vmatprep.subr.mxu0 0.0
      %896 = vmatpush2.msra.mxu0 0.0
      %897 = vmatprep.subr.mxu0 0.0
      %898 = vmatpush2.msra.mxu0 0.0
      %899 = vmatprep.subr.mxu0 0.0
      %900 = vmatpush2.msra.mxu0 0.0
      %901 = vmatprep.subr.mxu0 0.0
      %902 = vmatpush2.msra.mxu0 0.0
      %903 = vmatprep.mubr.f32.mxu0 0.0
      %904 = vmatmul.mubr.f32.gmra.mxu0 %v483
      %v905 = vpop.f32.mrf.mxu0
      %v906 = vadd.f32 0.0, %v905
      %v907 = vpop.f32.mrf.mxu0
      %908 = vmatprep.mubr.f32.mxu0 0.0
      %909 = vmatmul.mubr.f32.gmra.mxu0 %v486
      %v910 = vpop.f32.mrf.mxu0
      %v911 = vadd.f32 0.0, %v910
      %v912 = vpop.f32.mrf.mxu0
      %913 = vmatprep.mubr.f32.mxu0 0.0
      %914 = vmatmul.mubr.f32.gmra.mxu0 %v489
      %v915 = vpop.f32.mrf.mxu0
      %v916 = vadd.f32 0.0, %v915
      %v917 = vpop.f32.mrf.mxu0
      %918 = vmatprep.mubr.f32.mxu0 0.0
      %919 = vmatmul.mubr.f32.gmra.mxu0 %v492
      %v920 = vpop.f32.mrf.mxu0
      %v921 = vadd.f32 0.0, %v920
      %v922 = vpop.f32.mrf.mxu0
      %923 = vmatprep.mubr.f32.mxu0 0.0
      %924 = vmatmul.mubr.f32.gmra.mxu0 %v495
      %v925 = vpop.f32.mrf.mxu0
      %v926 = vadd.f32 0.0, %v925
      %v927 = vpop.f32.mrf.mxu0
      %928 = vmatprep.mubr.f32.mxu0 0.0
      %929 = vmatmul.mubr.f32.gmra.mxu0 %v498
      %v930 = vpop.f32.mrf.mxu0
      %v931 = vadd.f32 0.0, %v930
      %v932 = vpop.f32.mrf.mxu0
      %933 = vmatprep.mubr.f32.mxu0 0.0
      %934 = vmatmul.mubr.f32.gmra.mxu0 %v501
      %v935 = vpop.f32.mrf.mxu0
      %v936 = vadd.f32 0.0, %v935
      %v937 = vpop.f32.mrf.mxu0
      %938 = vmatprep.mubr.f32.mxu0 0.0
      %939 = vmatmul.mubr.f32.gmra.mxu0 %v504
      %v940 = vpop.f32.mrf.mxu0
      %v941 = vadd.f32 0.0, %v940
      %v942 = vpop.f32.mrf.mxu0
      %943 = vmatprep.mubr.f32.mxu0 0.0
      %944 = vmatmul.mubr.f32.gmra.mxu0 %v507
      %v945 = vpop.f32.mrf.mxu0
      %v946 = vadd.f32 0.0, %v945
      %v947 = vpop.f32.mrf.mxu0
      %948 = vmatprep.mubr.f32.mxu0 0.0
      %949 = vmatmul.mubr.f32.gmra.mxu0 %v510
      %v950 = vpop.f32.mrf.mxu0
      %v951 = vadd.f32 0.0, %v950
      %v952 = vpop.f32.mrf.mxu0
      %953 = vmatprep.mubr.f32.mxu0 0.0
      %954 = vmatmul.mubr.f32.gmra.mxu0 %v513
      %v955 = vpop.f32.mrf.mxu0
      %v956 = vadd.f32 0.0, %v955
      %v957 = vpop.f32.mrf.mxu0
      %958 = vmatprep.mubr.f32.mxu0 0.0
      %959 = vmatmul.mubr.f32.gmra.mxu0 %v516
      %v960 = vpop.f32.mrf.mxu0
      %v961 = vadd.f32 0.0, %v960
      %v962 = vpop.f32.mrf.mxu0
      %963 = vmatprep.mubr.f32.mxu0 0.0
      %964 = vmatmul.mubr.f32.gmra.mxu0 %v519
      %v965 = vpop.f32.mrf.mxu0
      %v966 = vadd.f32 0.0, %v965
      %v967 = vpop.f32.mrf.mxu0
      %968 = vmatprep.mubr.f32.mxu0 0.0
      %969 = vmatmul.mubr.f32.gmra.mxu0 %v522
      %v970 = vpop.f32.mrf.mxu0
      %v971 = vadd.f32 0.0, %v970
      %v972 = vpop.f32.mrf.mxu0
      %973 = vmatprep.mubr.f32.mxu0 0.0
      %974 = vmatmul.mubr.f32.gmra.mxu0 %v831
      %v975 = vpop.f32.mrf.mxu0
      %v976 = vadd.f32 0.0, %v975
      %v977 = vpop.f32.mrf.mxu0
      %978 = vmatprep.mubr.f32.mxu0 0.0
      %979 = vmatmul.mubr.f32.gmra.mxu0 %v834
      %v980 = vpop.f32.mrf.mxu0
      %v981 = vadd.f32 0.0, %v980
      %v982 = vpop.f32.mrf.mxu0
      %983 = vdwg.mxu0
      %v984 = vadd.f32 %v749, %v906
      %v985 = vadd.f32 %v754, %v911
      %v986 = vadd.f32 %v759, %v916
      %v987 = vadd.f32 %v764, %v921
      %v988 = vadd.f32 %v769, %v926
      %v989 = vadd.f32 %v774, %v931
      %v990 = vadd.f32 %v779, %v936
      %v991 = vadd.f32 %v784, %v941
      %v992 = vadd.f32 %v789, %v946
      %v993 = vadd.f32 %v794, %v951
      %v994 = vadd.f32 %v799, %v956
      %v995 = vadd.f32 %v804, %v961
      %v996 = vadd.f32 %v809, %v966
      %v997 = vadd.f32 %v814, %v971
      %v998 = vadd.f32 %v819, %v976
      %v999 = vadd.f32 %v824, %v981
      %v1000 = vld [vmem:[%s2] sm:$0x1]
      %v1002 = vlaneseq
      %v1003 = vshrl.u32 %v1002, 7
      %v1004 = vsub.s32 0, %v1003
      %v1005 = vrot.slane %v1000, %v1004
      %v1007 = vadd.f32 %v984, %v1005
      %v1008 = vadd.f32 %v985, %v1005
      %v1009 = vadd.f32 %v986, %v1005
      %v1010 = vadd.f32 %v987, %v1005
      %v1011 = vadd.f32 %v988, %v1005
      %v1012 = vadd.f32 %v989, %v1005
      %v1013 = vadd.f32 %v990, %v1005
      %v1014 = vadd.f32 %v991, %v1005
      %v1015 = vadd.f32 %v992, %v1005
      %v1016 = vadd.f32 %v993, %v1005
      %v1017 = vadd.f32 %v994, %v1005
      %v1018 = vadd.f32 %v995, %v1005
      %v1019 = vadd.f32 %v996, %v1005
      %v1020 = vadd.f32 %v997, %v1005
      %v1021 = vadd.f32 %v998, %v1005
      %v1022 = vadd.f32 %v999, %v1005
      %v1023 = vmul.f32 %v1007, 0.01
      %v1024 = vmul.f32 %v1008, 0.01
      %v1025 = vmul.f32 %v1009, 0.01
      %v1026 = vmul.f32 %v1010, 0.01
      %v1027 = vmul.f32 %v1011, 0.01
      %v1028 = vmul.f32 %v1012, 0.01
      %v1029 = vmul.f32 %v1013, 0.01
      %v1030 = vmul.f32 %v1014, 0.01
      %v1031 = vmul.f32 %v1015, 0.01
      %v1032 = vmul.f32 %v1016, 0.01
      %v1033 = vmul.f32 %v1017, 0.01
      %v1034 = vmul.f32 %v1018, 0.01
      %v1035 = vmul.f32 %v1019, 0.01
      %v1036 = vmul.f32 %v1020, 0.01
      %v1037 = vmul.f32 %v1021, 0.01
      %v1038 = vmul.f32 %v1022, 0.01
      %v1039 = vmax.f32 %v1007, %v1023
      %v1040 = vmax.f32 %v1008, %v1024
      %v1041 = vmax.f32 %v1009, %v1025
      %v1042 = vmax.f32 %v1010, %v1026
      %v1043 = vmax.f32 %v1011, %v1027
      %v1044 = vmax.f32 %v1012, %v1028
      %v1045 = vmax.f32 %v1013, %v1029
      %v1046 = vmax.f32 %v1014, %v1030
      %v1047 = vmax.f32 %v1015, %v1031
      %v1048 = vmax.f32 %v1016, %v1032
      %v1049 = vmax.f32 %v1017, %v1033
      %v1050 = vmax.f32 %v1018, %v1034
      %v1051 = vmax.f32 %v1019, %v1035
      %v1052 = vmax.f32 %v1020, %v1036
      %v1053 = vmax.f32 %v1021, %v1037
      %v1054 = vmax.f32 %v1022, %v1038
      %1055 = vst.msk [vmem:[%s206] sm:$0xff] %vm449, %v1039
      %1056 = vst.msk [vmem:[%s206 + $0x8] sm:$0xff] %vm449, %v1040
      %1057 = vst.msk [vmem:[%s206 + $0x10] sm:$0xff] %vm449, %v1041
      %1058 = vst.msk [vmem:[%s206 + $0x18] sm:$0xff] %vm449, %v1042
      %1059 = vst.msk [vmem:[%s206 + $0x20] sm:$0xff] %vm449, %v1043
      %1060 = vst.msk [vmem:[%s206 + $0x28] sm:$0xff] %vm449, %v1044
      %1061 = vst.msk [vmem:[%s206 + $0x30] sm:$0xff] %vm449, %v1045
      %1062 = vst.msk [vmem:[%s206 + $0x38] sm:$0xff] %vm449, %v1046
      %1063 = vst.msk [vmem:[%s206 + $0x40] sm:$0xff] %vm449, %v1047
      %1064 = vst.msk [vmem:[%s206 + $0x48] sm:$0xff] %vm449, %v1048
      %1065 = vst.msk [vmem:[%s206 + $0x50] sm:$0xff] %vm449, %v1049
      %1066 = vst.msk [vmem:[%s206 + $0x58] sm:$0xff] %vm449, %v1050
      %1067 = vst.msk [vmem:[%s206 + $0x60] sm:$0xff] %vm449, %v1051
      %1068 = vst.msk [vmem:[%s206 + $0x68] sm:$0xff] %vm449, %v1052
      %1069 = vst.msk [vmem:[%s206 + $0x70] sm:$0xff] %vm449, %v1053
      %1070 = vst.msk [vmem:[%s206 + $0x78] sm:$0xff] %vm449, %v1054
      %s1071 = smul.u32 16, %s19
      %p1072 = scmp.lt.s32.totalorder %s18, 1
      %s1073 = scalar_select %p1072, %s18, 1
      %p1074 = scmp.lt.s32.totalorder %s1071, 31
      %s1075 = scalar_select %p1074, %s1071, 31
      %s1076 = smul.addr %s1073, 32
      %s1077 = sadd.s32 %s1075, %s1076
      %s1078 = smul.addr %s1077, 8
      %s1079 = scalar_lea.vmem %s3, %s1078
      // Predicated region
      $region33: #{tpu_custom_call.1} parent=31 // pred_check
        %p1080 = pneg %p116
      $region34: #{tpu_custom_call.1} parent=31 // pred_check_branch
        %1082 = sbr.rel (%p1080) target = $region36
      $region35: #{tpu_custom_call.1} parent=31 // pred_region
        %s1083 = smul.u32 16, %s19
      $region36: #{tpu_custom_call.1} parent=31 // pred_fallthru
        _
    $region32: #{tpu_custom_call.1} parent=5 // pred_fallthru
      _
    %p1084 = scmp.le.s32.totalorder 2, %s9
    // Predicated region
    $region37: #{tpu_custom_call.1} parent=5 // pred_check
      %p1085 = pneg %p1084
    $region38: #{tpu_custom_call.1} parent=5 // pred_check_branch
      %1087 = sbr.rel (%p1085) target = $region40
    $region39: #{tpu_custom_call.1} parent=5 // pred_region
      %s1088 = ssub.s32 %s9, 2
      // Predicated region
      $region41: #{tpu_custom_call.1} parent=39 // pred_check
        %p1089 = pneg %p122
      $region42: #{tpu_custom_call.1} parent=39 // pred_check_branch
        %1091 = sbr.rel (%p1089) target = $region44
      $region43: #{tpu_custom_call.1} parent=39 // pred_region
        %s1092 = smul.u32 16, %s21
        %p1093 = scmp.lt.s32.totalorder %s20, 1
        %s1094 = scalar_select %p1093, %s20, 1
        %p1095 = scmp.lt.s32.totalorder %s1092, 31
        %s1096 = scalar_select %p1095, %s1092, 31
        %s1097 = smul.addr %s1094, 32
        %s1098 = sadd.s32 %s1096, %s1097
        %s1099 = smul.addr %s1098, 8
        %s1100 = scalar_lea.vmem %s3, %s1099
      $region44: #{tpu_custom_call.1} parent=39 // pred_fallthru
        _
    $region40: #{tpu_custom_call.1} parent=5 // pred_fallthru
      _
  $region6: #{tpu_custom_call.1} parent=0 // loop_footer
    %s13 = sadd.s32 1, %s9
  $region7: #{tpu_custom_call.1} parent=0 // loop_footer_branch
    %8 = sbr.rel target = $region3
  $region8: #{tpu_custom_call.1} parent=0 // loop_exit
    _

</llo_original>
